<compile_context>
chip_gen: v5e
topology: v5e:2x2
jax: 0.10.0
libtpu: 0.0.40
codegen_flags: <defaults>
</compile_context>

<pallas_src>
import jax
import jax.numpy as jnp
from jax.experimental import pallas as pl
from jax.experimental.pallas import tpu as pltpu

EPS = 1e-5  # BatchNorm1d default eps


def _bn_relu(f, gamma, beta, mean, inv_std):
    """BN(affine) -> ReLU as a single scale/offset FMA."""
    scale = gamma * inv_std
    offset = beta - mean * scale
    return jnp.maximum(f * scale + offset, 0.0)


def _tirg_kernel(a0_ref, f1_ref, f2_ref, bn_ref, bg_ref,
                 wg_ref, wr1_ref, br1_ref, wr2_ref, br2_ref,
                 out_ref,
                 hg_scr, hr_scr, fgate_scr):
    j = pl.program_id(0)
    nk = pl.num_programs(0)
    tn = hg_scr.shape[2]

    @pl.when(j == 0)
    def _init():
        f1 = f1_ref[...]
        f2 = f2_ref[...]
        bn = bn_ref[...]

        # BatchNorm1d training-mode (biased) batch statistics, computed per
        # half of the virtual concat(features1, features2).
        m1 = jnp.mean(f1, axis=0, keepdims=True)
        v1 = jnp.mean((f1 - m1) ** 2, axis=0, keepdims=True)
        i1 = jax.lax.rsqrt(v1 + EPS)
        m2 = jnp.mean(f2, axis=0, keepdims=True)
        v2 = jnp.mean((f2 - m2) ** 2, axis=0, keepdims=True)
        i2 = jax.lax.rsqrt(v2 + EPS)

        # BN -> ReLU hidden activations for both composer paths (bf16 for MXU).
        # bn rows: 0/1 gated gamma (f1,f2 halves), 2/3 gated beta,
        #          4/5 res gamma, 6/7 res beta.
        hg = jnp.concatenate(
            [_bn_relu(f1, bn[0:1], bn[2:3], m1, i1),
             _bn_relu(f2, bn[1:2], bn[3:4], m2, i2)],
            axis=1).astype(jnp.bfloat16)
        hr = jnp.concatenate(
            [_bn_relu(f1, bn[4:5], bn[6:7], m1, i1),
             _bn_relu(f2, bn[5:6], bn[7:8], m2, i2)],
            axis=1).astype(jnp.bfloat16)
        hr_scr[...] = hr
        # Pre-slice the gated-path activations into (nk, B, tn) slabs so the
        # streamed loop below reads tile j with a cheap leading-axis index.
        for k in range(hg_scr.shape[0]):          # static trip count (trace time)
            hg_scr[k] = hg[:, k * tn:(k + 1) * tn]

        # Resident f32 accumulators: f_gate starts at its bias, the output
        # starts at the (a[1]-folded) res-path bias.
        fgate_scr[...] = jnp.broadcast_to(bg_ref[...], fgate_scr.shape)
        out_ref[...] = jnp.broadcast_to(br2_ref[...], out_ref.shape)

    # ---- streamed per-tile work (grid axis j over the hidden 2D dim) -------
    # gated path partial: f_gate += hg[:, tile_j] @ Wg[tile_j, :]
    fgate_scr[...] += jnp.dot(hg_scr[j], wg_ref[...],
                              preferred_element_type=jnp.float32)

    # res path partial: t_j = relu(hr @ W1[:, tile_j] + b1[tile_j])
    #                   out += t_j @ (a1 * W2)[tile_j, :]
    t = jnp.dot(hr_scr[...], wr1_ref[...],
                preferred_element_type=jnp.float32) + br1_ref[...]
    t = jnp.maximum(t, 0.0).astype(jnp.bfloat16)
    out_ref[...] += jnp.dot(t, wr2_ref[...],
                            preferred_element_type=jnp.float32)

    @pl.when(j == nk - 1)
    def _finish():
        # out += sigmoid(f_gate) * features1 * a[0]   (a[1]*b2 already folded in)
        out_ref[...] += (jax.nn.sigmoid(fgate_scr[...])
                         * f1_ref[...] * a0_ref[0, 0])


def _vmem_capacity_bytes():
    try:
        return int(pltpu.get_tpu_info().vmem_capacity_bytes)
    except Exception:
        return 128 << 20  # v5e/v6e physical VMEM; safe fallback


def _vmem_demand(batch, d, tn):
    """Rough VMEM demand (bytes) for one combine() call at tile width tn."""
    f4, b2 = 4, 2
    d2 = 2 * d
    resident = (2 * 2 * batch * d * f4     # features1/2 (double-buffered blocks)
                + 2 * 8 * d * f4           # packed BN params
                + 2 * 2 * d * f4           # bg, br2
                + 2 * batch * d * f4       # output accumulator
                + 2 * batch * d2 * b2      # hg + hr bf16 scratch
                + batch * d * f4)          # f_gate f32 scratch
    streamed = 2 * tn * (d2 * b2 + 2 * d * b2 + f4)  # wr1 + (wg+wr2) + br1, 2-deep
    return resident + streamed


def _pick_tile(batch, d, vmem_budget):
    """Largest hidden-2D tile (multiple of 128, or the full 2D) fitting VMEM."""
    d2 = 2 * d
    candidates = [t for t in (2048, 1024, 512, 256, 128) if d2 % t == 0]
    if not candidates:
        return d2                          # small dims: single full-size step
    for t in candidates:
        if _vmem_demand(batch, d, t) <= int(0.85 * vmem_budget):
            return t
    return candidates[-1]


def tirg_combine(features1, features2, packed, tile_n=None):
    """One TirgCombiner.combine() step as a single fused, pipelined kernel."""
    B, D = features1.shape
    D2 = 2 * D
    budget = int(0.75 * _vmem_capacity_bytes())   # headroom for compiler temps
    tn = tile_n if tile_n is not None else _pick_tile(B, D, budget)
    assert D2 % tn == 0 and (tn % 128 == 0 or tn == D2)
    nk = D2 // tn
    vmem_limit = int(min(max(2 * _vmem_demand(B, D, tn), 32 << 20), budget))

    c0 = lambda j: (0, 0)

    return pl.pallas_call(
        _tirg_kernel,
        out_shape=jax.ShapeDtypeStruct((B, D), jnp.float32),
        grid=(nk,),
        in_specs=[
            pl.BlockSpec(memory_space=pltpu.MemorySpace.SMEM),  # a0 scalar
            pl.BlockSpec((B, D), c0),     # features1 (resident)
            pl.BlockSpec((B, D), c0),     # features2 (resident)
            pl.BlockSpec((8, D), c0),     # packed BN gamma/beta (resident)
            pl.BlockSpec((1, D), c0),     # bg (resident)
            pl.BlockSpec((tn, D), lambda j: (j, 0)),   # wg tile   (bf16, streamed)
            pl.BlockSpec((D2, tn), lambda j: (0, j)),  # wr1 tile  (bf16, streamed)
            pl.BlockSpec((1, tn), lambda j: (0, j)),   # br1 tile  (streamed)
            pl.BlockSpec((tn, D), lambda j: (j, 0)),   # wr2 tile  (bf16, a1 folded)
            pl.BlockSpec((1, D), c0),     # br2 (a1 folded, resident)
        ],
        out_specs=pl.BlockSpec((B, D), c0),
        scratch_shapes=[pltpu.VMEM((nk, B, tn), jnp.bfloat16),  # hg tiles
                        pltpu.VMEM((B, D2), jnp.bfloat16),      # hr
                        pltpu.VMEM((B, D), jnp.float32)],       # f_gate accum
        compiler_params=pltpu.CompilerParams(
            dimension_semantics=("arbitrary",),
            vmem_limit_bytes=vmem_limit),
    )(packed["a0"], features1, features2, packed["bn"], packed["bg"],
      packed["wg"], packed["wr1"], packed["br1"], packed["wr2"], packed["br2"])


def tirg_forward(features, packed, tile_n=None):
    """TirgCombiner.forward: left-fold combine over the feature list."""
    rez = features[0]
    for i in range(1, len(features)):
        rez = tirg_combine(rez, features[i], packed, tile_n=tile_n)
    return rez


def init_params(key, embed_dim):
    """Deterministic synthetic parameters matching the module's shapes (f32)."""
    D = embed_dim
    ks = jax.random.split(key, 3)

    def linear(k, fan_in, fan_out):
        bound = 1.0 / float(fan_in) ** 0.5
        kw, kb = jax.random.split(k)
        w = jax.random.uniform(kw, (fan_out, fan_in), jnp.float32, -bound, bound)
        b = jax.random.uniform(kb, (fan_out,), jnp.float32, -bound, bound)
        return w, b

    wg, bg = linear(ks[0], 2 * D, D)          # gated Linear(2D -> D)
    wr1, br1 = linear(ks[1], 2 * D, 2 * D)    # res  Linear(2D -> 2D)
    wr2, br2 = linear(ks[2], 2 * D, D)        # res  Linear(2D -> D)
    return dict(
        a=jnp.array([1.0, 10.0, 1.0, 1.0], jnp.float32),
        g_gamma=jnp.ones((2 * D,), jnp.float32),
        g_beta=jnp.zeros((2 * D,), jnp.float32),
        r_gamma=jnp.ones((2 * D,), jnp.float32),
        r_beta=jnp.zeros((2 * D,), jnp.float32),
        wg=wg, bg=bg, wr1=wr1, br1=br1, wr2=wr2, br2=br2)


def pack_params(params, embed_dim):
    """Kernel-layout params: bf16 weights, packed BN params, a[1] folded."""
    D = embed_dim
    a = params["a"]
    a1 = a[1]
    gg, gb = params["g_gamma"], params["g_beta"]
    rg, rb = params["r_gamma"], params["r_beta"]
    bn = jnp.stack([gg[:D], gg[D:], gb[:D], gb[D:],
                    rg[:D], rg[D:], rb[:D], rb[D:]], axis=0)   # (8, D)
    # TODO(synk): optional int8 (v5e/v6e) / fp8 (v7x) weight streaming with
    # per-column scales would halve HBM traffic in this memory-bound kernel.
    return dict(
        a0=a[0].reshape(1, 1),
        bn=bn,
        wg=params["wg"].T.astype(jnp.bfloat16),            # (2D, D)
        bg=params["bg"].reshape(1, D),
        wr1=params["wr1"].T.astype(jnp.bfloat16),           # (2D, 2D)
        br1=params["br1"].reshape(1, 2 * D),
        wr2=(params["wr2"].T * a1).astype(jnp.bfloat16),    # (2D, D), a[1] folded
        br2=(params["br2"] * a1).reshape(1, D),             # a[1] folded
    )


def _reference_combine(f1, f2, packed):
    """Pure-JAX reference mirroring the kernel math (same packed bf16 weights)."""
    bn = packed["bn"]

    def bn_relu(f, gamma, beta):
        m = jnp.mean(f, axis=0, keepdims=True)
        v = jnp.mean((f - m) ** 2, axis=0, keepdims=True)
        scale = gamma * jax.lax.rsqrt(v + EPS)
        return jnp.maximum(f * scale + (beta - m * scale), 0.0)

    def bdot(x, w):
        return jnp.dot(x.astype(jnp.bfloat16), w,
                       preferred_element_type=jnp.float32)

    hg = jnp.concatenate([bn_relu(f1, bn[0:1], bn[2:3]),
                          bn_relu(f2, bn[1:2], bn[3:4])], axis=1)
    hr = jnp.concatenate([bn_relu(f1, bn[4:5], bn[6:7]),
                          bn_relu(f2, bn[5:6], bn[7:8])], axis=1)
    f_gate = bdot(hg, packed["wg"]) + packed["bg"]
    t = jnp.maximum(bdot(hr, packed["wr1"]) + packed["br1"], 0.0)
    f_res = bdot(t, packed["wr2"]) + packed["br2"]          # a[1] already folded
    return jax.nn.sigmoid(f_gate) * f1 * packed["a0"][0, 0] + f_res


if __name__ == "__main__":
    key = jax.random.PRNGKey(0)
    k1, k2, kp = jax.random.split(key, 3)

    # Small demo consistent with the module: batch=8, embed_size=32.
    batch, embed_dim = 8, 32
    features = [jax.random.normal(k1, (batch, embed_dim), jnp.float32),
                jax.random.normal(k2, (batch, embed_dim), jnp.float32)]
    params = init_params(kp, embed_dim)
    packed = pack_params(params, embed_dim)

    out = jax.block_until_ready(tirg_forward(features, packed))

    ref = features[0]
    for i in range(1, len(features)):
        ref = _reference_combine(ref, features[i], packed)
    assert out.shape == (batch, embed_dim)
    assert jnp.allclose(out, ref, atol=2e-3, rtol=2e-3), "mismatch vs reference"

    # Second check exercising the multi-step (streamed, accumulating) grid path.
    k3, k4, kp2 = jax.random.split(jax.random.PRNGKey(1), 3)
    batch2, embed_dim2 = 16, 128
    features_b = [jax.random.normal(k3, (batch2, embed_dim2), jnp.float32),
                  jax.random.normal(k4, (batch2, embed_dim2), jnp.float32)]
    params_b = init_params(kp2, embed_dim2)
    packed_b = pack_params(params_b, embed_dim2)
    out_b = jax.block_until_ready(
        tirg_forward(features_b, packed_b, tile_n=128))   # 2D=256 -> 2 grid steps
    ref_b = _reference_combine(features_b[0], features_b[1], packed_b)
    assert jnp.allclose(out_b, ref_b, atol=2e-3, rtol=2e-3), "mismatch (tiled path)"

    print("KERNEL_OK")
</pallas_src>

<mosaic_0001>
module attributes {stable_mosaic.version = 11 : i64} {
  func.func @_tirg_kernel(%arg0: i32, %arg1: memref<1x1xf32, #tpu.memory_space<smem>>, %arg2: memref<8x32xf32, #tpu.memory_space<vmem>>, %arg3: memref<8x32xf32, #tpu.memory_space<vmem>>, %arg4: memref<8x32xf32, #tpu.memory_space<vmem>>, %arg5: memref<1x32xf32, #tpu.memory_space<vmem>>, %arg6: memref<64x32xbf16, #tpu.memory_space<vmem>>, %arg7: memref<64x64xbf16, #tpu.memory_space<vmem>>, %arg8: memref<1x64xf32, #tpu.memory_space<vmem>>, %arg9: memref<64x32xbf16, #tpu.memory_space<vmem>>, %arg10: memref<1x32xf32, #tpu.memory_space<vmem>>, %arg11: memref<8x32xf32, #tpu.memory_space<vmem>>, %arg12: memref<1x8x64xbf16, #tpu.memory_space<vmem>>, %arg13: memref<8x64xbf16, #tpu.memory_space<vmem>>, %arg14: memref<8x32xf32, #tpu.memory_space<vmem>>) attributes {dimension_semantics = [#tpu.dimension_semantics<arbitrary>], iteration_bounds = array<i64: 1>, scalar_prefetch = 0 : i64, scratch_operands = 3 : i64, tpu.core_type = #tpu.core_type<tc>, window_params = [{transform_indices = @transform_0, window_bounds = array<i64: 1, 1>}, {pipeline_mode = #tpu.pipeline_mode<synchronous>, transform_indices = @transform_1, window_bounds = array<i64: 8, 32>}, {pipeline_mode = #tpu.pipeline_mode<synchronous>, transform_indices = @transform_2, window_bounds = array<i64: 8, 32>}, {pipeline_mode = #tpu.pipeline_mode<synchronous>, transform_indices = @transform_3, window_bounds = array<i64: 8, 32>}, {pipeline_mode = #tpu.pipeline_mode<synchronous>, transform_indices = @transform_4, window_bounds = array<i64: 1, 32>}, {transform_indices = @transform_5, window_bounds = array<i64: 64, 32>}, {transform_indices = @transform_6, window_bounds = array<i64: 64, 64>}, {transform_indices = @transform_7, window_bounds = array<i64: 1, 64>}, {transform_indices = @transform_8, window_bounds = array<i64: 64, 32>}, {pipeline_mode = #tpu.pipeline_mode<synchronous>, transform_indices = @transform_9, window_bounds = array<i64: 1, 32>}, {pipeline_mode = #tpu.pipeline_mode<synchronous>, transform_indices = @transform_10, window_bounds = array<i64: 8, 32>}]} {
    %c0_i32 = arith.constant 0 : i32
    %0 = arith.cmpi eq, %arg0, %c0_i32 : i32
    %1 = arith.extui %0 : i1 to i32
    %c0_i32_0 = arith.constant 0 : i32
    %2 = arith.cmpi ne, %1, %c0_i32_0 : i32
    scf.if %2 {
      %c0_25 = arith.constant 0 : index
      %c0_26 = arith.constant 0 : index
      %28 = vector.load %arg2[%c0_25, %c0_26] : memref<8x32xf32, #tpu.memory_space<vmem>>, vector<8x32xf32>
      %c0_27 = arith.constant 0 : index
      %c0_28 = arith.constant 0 : index
      %29 = vector.load %arg3[%c0_27, %c0_28] : memref<8x32xf32, #tpu.memory_space<vmem>>, vector<8x32xf32>
      %c0_29 = arith.constant 0 : index
      %c0_30 = arith.constant 0 : index
      %30 = vector.load %arg4[%c0_29, %c0_30] : memref<8x32xf32, #tpu.memory_space<vmem>>, vector<8x32xf32>
      %cst_31 = arith.constant dense<0.000000e+00> : vector<32xf32>
      %31 = vector.multi_reduction <add>, %28, %cst_31 [0] : vector<8x32xf32> to vector<32xf32>
      %32 = vector.shape_cast %31 : vector<32xf32> to vector<1x32xf32>
      %cst_32 = arith.constant 8.000000e+00 : f32
      %33 = vector.broadcast %cst_32 : f32 to vector<1x32xf32>
      %34 = arith.divf %32, %33 : vector<1x32xf32>
      %35 = vector.broadcast %34 : vector<1x32xf32> to vector<8x32xf32>
      %36 = arith.subf %28, %35 : vector<8x32xf32>
      %37 = arith.mulf %36, %36 : vector<8x32xf32>
      %cst_33 = arith.constant dense<0.000000e+00> : vector<32xf32>
      %38 = vector.multi_reduction <add>, %37, %cst_33 [0] : vector<8x32xf32> to vector<32xf32>
      %39 = vector.shape_cast %38 : vector<32xf32> to vector<1x32xf32>
      %cst_34 = arith.constant 8.000000e+00 : f32
      %40 = vector.broadcast %cst_34 : f32 to vector<1x32xf32>
      %41 = arith.divf %39, %40 : vector<1x32xf32>
      %cst_35 = arith.constant 9.99999974E-6 : f32
      %42 = vector.broadcast %cst_35 : f32 to vector<1x32xf32>
      %43 = arith.addf %41, %42 : vector<1x32xf32>
      %44 = math.rsqrt %43 : vector<1x32xf32>
      %cst_36 = arith.constant dense<0.000000e+00> : vector<32xf32>
      %45 = vector.multi_reduction <add>, %29, %cst_36 [0] : vector<8x32xf32> to vector<32xf32>
      %46 = vector.shape_cast %45 : vector<32xf32> to vector<1x32xf32>
      %cst_37 = arith.constant 8.000000e+00 : f32
      %47 = vector.broadcast %cst_37 : f32 to vector<1x32xf32>
      %48 = arith.divf %46, %47 : vector<1x32xf32>
      %49 = vector.broadcast %48 : vector<1x32xf32> to vector<8x32xf32>
      %50 = arith.subf %29, %49 : vector<8x32xf32>
      %51 = arith.mulf %50, %50 : vector<8x32xf32>
      %cst_38 = arith.constant dense<0.000000e+00> : vector<32xf32>
      %52 = vector.multi_reduction <add>, %51, %cst_38 [0] : vector<8x32xf32> to vector<32xf32>
      %53 = vector.shape_cast %52 : vector<32xf32> to vector<1x32xf32>
      %cst_39 = arith.constant 8.000000e+00 : f32
      %54 = vector.broadcast %cst_39 : f32 to vector<1x32xf32>
      %55 = arith.divf %53, %54 : vector<1x32xf32>
      %cst_40 = arith.constant 9.99999974E-6 : f32
      %56 = vector.broadcast %cst_40 : f32 to vector<1x32xf32>
      %57 = arith.addf %55, %56 : vector<1x32xf32>
      %58 = math.rsqrt %57 : vector<1x32xf32>
      %59 = vector.extract_strided_slice %30 {offsets = [0, 0], sizes = [1, 32], strides = [1, 1]} : vector<8x32xf32> to vector<1x32xf32>
      %60 = vector.extract_strided_slice %30 {offsets = [2, 0], sizes = [1, 32], strides = [1, 1]} : vector<8x32xf32> to vector<1x32xf32>
      %61 = arith.mulf %59, %44 : vector<1x32xf32>
      %62 = arith.mulf %34, %61 : vector<1x32xf32>
      %63 = arith.subf %60, %62 : vector<1x32xf32>
      %64 = vector.broadcast %61 : vector<1x32xf32> to vector<8x32xf32>
      %65 = arith.mulf %28, %64 : vector<8x32xf32>
      %66 = vector.broadcast %63 : vector<1x32xf32> to vector<8x32xf32>
      %67 = arith.addf %65, %66 : vector<8x32xf32>
      %cst_41 = arith.constant 0.000000e+00 : f32
      %68 = vector.broadcast %cst_41 : f32 to vector<8x32xf32>
      %69 = arith.maximumf %67, %68 : vector<8x32xf32>
      %70 = vector.extract_strided_slice %30 {offsets = [1, 0], sizes = [1, 32], strides = [1, 1]} : vector<8x32xf32> to vector<1x32xf32>
      %71 = vector.extract_strided_slice %30 {offsets = [3, 0], sizes = [1, 32], strides = [1, 1]} : vector<8x32xf32> to vector<1x32xf32>
      %72 = arith.mulf %70, %58 : vector<1x32xf32>
      %73 = arith.mulf %48, %72 : vector<1x32xf32>
      %74 = arith.subf %71, %73 : vector<1x32xf32>
      %75 = vector.broadcast %72 : vector<1x32xf32> to vector<8x32xf32>
      %76 = arith.mulf %29, %75 : vector<8x32xf32>
      %77 = vector.broadcast %74 : vector<1x32xf32> to vector<8x32xf32>
      %78 = arith.addf %76, %77 : vector<8x32xf32>
      %cst_42 = arith.constant 0.000000e+00 : f32
      %79 = vector.broadcast %cst_42 : f32 to vector<8x32xf32>
      %80 = arith.maximumf %78, %79 : vector<8x32xf32>
      %81 = tpu.concatenate %69, %80 in 1 : vector<8x32xf32>, vector<8x32xf32> -> vector<8x64xf32>
      %82 = arith.truncf %81 : vector<8x64xf32> to vector<8x64xbf16>
      %83 = vector.extract_strided_slice %30 {offsets = [4, 0], sizes = [1, 32], strides = [1, 1]} : vector<8x32xf32> to vector<1x32xf32>
      %84 = vector.extract_strided_slice %30 {offsets = [6, 0], sizes = [1, 32], strides = [1, 1]} : vector<8x32xf32> to vector<1x32xf32>
      %85 = arith.mulf %83, %44 : vector<1x32xf32>
      %86 = arith.mulf %34, %85 : vector<1x32xf32>
      %87 = arith.subf %84, %86 : vector<1x32xf32>
      %88 = vector.broadcast %85 : vector<1x32xf32> to vector<8x32xf32>
      %89 = arith.mulf %28, %88 : vector<8x32xf32>
      %90 = vector.broadcast %87 : vector<1x32xf32> to vector<8x32xf32>
      %91 = arith.addf %89, %90 : vector<8x32xf32>
      %cst_43 = arith.constant 0.000000e+00 : f32
      %92 = vector.broadcast %cst_43 : f32 to vector<8x32xf32>
      %93 = arith.maximumf %91, %92 : vector<8x32xf32>
      %94 = vector.extract_strided_slice %30 {offsets = [5, 0], sizes = [1, 32], strides = [1, 1]} : vector<8x32xf32> to vector<1x32xf32>
      %95 = vector.extract_strided_slice %30 {offsets = [7, 0], sizes = [1, 32], strides = [1, 1]} : vector<8x32xf32> to vector<1x32xf32>
      %96 = arith.mulf %94, %58 : vector<1x32xf32>
      %97 = arith.mulf %48, %96 : vector<1x32xf32>
      %98 = arith.subf %95, %97 : vector<1x32xf32>
      %99 = vector.broadcast %96 : vector<1x32xf32> to vector<8x32xf32>
      %100 = arith.mulf %29, %99 : vector<8x32xf32>
      %101 = vector.broadcast %98 : vector<1x32xf32> to vector<8x32xf32>
      %102 = arith.addf %100, %101 : vector<8x32xf32>
      %cst_44 = arith.constant 0.000000e+00 : f32
      %103 = vector.broadcast %cst_44 : f32 to vector<8x32xf32>
      %104 = arith.maximumf %102, %103 : vector<8x32xf32>
      %105 = tpu.concatenate %93, %104 in 1 : vector<8x32xf32>, vector<8x32xf32> -> vector<8x64xf32>
      %106 = arith.truncf %105 : vector<8x64xf32> to vector<8x64xbf16>
      %c0_45 = arith.constant 0 : index
      %c0_46 = arith.constant 0 : index
      %107 = vector.load %arg13[%c0_45, %c0_46] : memref<8x64xbf16, #tpu.memory_space<vmem>>, vector<8x64xbf16>
      tpu.vector_store %arg13[%c0_45, %c0_46], %106 {strides = array<i32>} : memref<8x64xbf16, #tpu.memory_space<vmem>>, vector<8x64xbf16>,
      %c0_47 = arith.constant 0 : index
      %c0_48 = arith.constant 0 : index
      %c0_49 = arith.constant 0 : index
      %108 = vector.load %arg12[%c0_47, %c0_48, %c0_49] : memref<1x8x64xbf16, #tpu.memory_space<vmem>>, vector<1x8x64xbf16>
      %109 = vector.shape_cast %108 : vector<1x8x64xbf16> to vector<8x64xbf16>
      %110 = vector.shape_cast %82 : vector<8x64xbf16> to vector<1x8x64xbf16>
      tpu.vector_store %arg12[%c0_47, %c0_48, %c0_49], %110 {strides = array<i32>} : memref<1x8x64xbf16, #tpu.memory_space<vmem>>, vector<1x8x64xbf16>,
      %c0_50 = arith.constant 0 : index
      %c0_51 = arith.constant 0 : index
      %111 = vector.load %arg5[%c0_50, %c0_51] : memref<1x32xf32, #tpu.memory_space<vmem>>, vector<1x32xf32>
      %112 = vector.shape_cast %111 : vector<1x32xf32> to vector<1x32xf32>
      %113 = vector.broadcast %112 : vector<1x32xf32> to vector<8x32xf32>
      %c0_52 = arith.constant 0 : index
      %c0_53 = arith.constant 0 : index
      %114 = vector.load %arg14[%c0_52, %c0_53] : memref<8x32xf32, #tpu.memory_space<vmem>>, vector<8x32xf32>
      tpu.vector_store %arg14[%c0_52, %c0_53], %113 {strides = array<i32>} : memref<8x32xf32, #tpu.memory_space<vmem>>, vector<8x32xf32>,
      %c0_54 = arith.constant 0 : index
      %c0_55 = arith.constant 0 : index
      %115 = vector.load %arg10[%c0_54, %c0_55] : memref<1x32xf32, #tpu.memory_space<vmem>>, vector<1x32xf32>
      %116 = vector.shape_cast %115 : vector<1x32xf32> to vector<1x32xf32>
      %117 = vector.broadcast %116 : vector<1x32xf32> to vector<8x32xf32>
      %c0_56 = arith.constant 0 : index
      %c0_57 = arith.constant 0 : index
      %118 = vector.load %arg11[%c0_56, %c0_57] : memref<8x32xf32, #tpu.memory_space<vmem>>, vector<8x32xf32>
      tpu.vector_store %arg11[%c0_56, %c0_57], %117 {strides = array<i32>} : memref<8x32xf32, #tpu.memory_space<vmem>>, vector<8x32xf32>,
    } else {
    }
    %c0 = arith.constant 0 : index
    %c0_1 = arith.constant 0 : index
    %3 = vector.load %arg14[%c0, %c0_1] : memref<8x32xf32, #tpu.memory_space<vmem>>, vector<8x32xf32>
    %4 = arith.index_cast %arg0 : i32 to index
    %c0_2 = arith.constant 0 : index
    %c0_3 = arith.constant 0 : index
    %5 = vector.load %arg12[%4, %c0_2, %c0_3] : memref<1x8x64xbf16, #tpu.memory_space<vmem>>, vector<1x8x64xbf16>
    %6 = vector.shape_cast %5 : vector<1x8x64xbf16> to vector<8x64xbf16>
    %c0_4 = arith.constant 0 : index
    %c0_5 = arith.constant 0 : index
    %7 = vector.load %arg6[%c0_4, %c0_5] : memref<64x32xbf16, #tpu.memory_space<vmem>>, vector<64x32xbf16>
    %cst = arith.constant dense<0.000000e+00> : vector<8x32xf32>
    %8 = tpu.matmul %6, %7, %cst {dimension_numbers = #tpu.dot_dimension_numbers<[1], [0], [0], [1], [0, 0, 1, 1], [], []>} : vector<8x64xbf16>, vector<64x32xbf16>, vector<8x32xf32> -> vector<8x32xf32>
    %9 = arith.addf %3, %8 : vector<8x32xf32>
    %c0_6 = arith.constant 0 : index
    %c0_7 = arith.constant 0 : index
    %10 = vector.load %arg14[%c0_6, %c0_7] : memref<8x32xf32, #tpu.memory_space<vmem>>, vector<8x32xf32>
    tpu.vector_store %arg14[%c0_6, %c0_7], %9 {strides = array<i32>} : memref<8x32xf32, #tpu.memory_space<vmem>>, vector<8x32xf32>,
    %c0_8 = arith.constant 0 : index
    %c0_9 = arith.constant 0 : index
    %11 = vector.load %arg13[%c0_8, %c0_9] : memref<8x64xbf16, #tpu.memory_space<vmem>>, vector<8x64xbf16>
    %c0_10 = arith.constant 0 : index
    %c0_11 = arith.constant 0 : index
    %12 = vector.load %arg7[%c0_10, %c0_11] : memref<64x64xbf16, #tpu.memory_space<vmem>>, vector<64x64xbf16>
    %cst_12 = arith.constant dense<0.000000e+00> : vector<8x64xf32>
    %13 = tpu.matmul %11, %12, %cst_12 {dimension_numbers = #tpu.dot_dimension_numbers<[1], [0], [0], [1], [0, 0, 1, 1], [], []>} : vector<8x64xbf16>, vector<64x64xbf16>, vector<8x64xf32> -> vector<8x64xf32>
    %c0_13 = arith.constant 0 : index
    %c0_14 = arith.constant 0 : index
    %14 = vector.load %arg8[%c0_13, %c0_14] : memref<1x64xf32, #tpu.memory_space<vmem>>, vector<1x64xf32>
    %15 = vector.broadcast %14 : vector<1x64xf32> to vector<8x64xf32>
    %16 = arith.addf %13, %15 : vector<8x64xf32>
    %cst_15 = arith.constant 0.000000e+00 : f32
    %17 = vector.broadcast %cst_15 : f32 to vector<8x64xf32>
    %18 = arith.maximumf %16, %17 : vector<8x64xf32>
    %19 = arith.truncf %18 : vector<8x64xf32> to vector<8x64xbf16>
    %c0_16 = arith.constant 0 : index
    %c0_17 = arith.constant 0 : index
    %20 = vector.load %arg11[%c0_16, %c0_17] : memref<8x32xf32, #tpu.memory_space<vmem>>, vector<8x32xf32>
    %c0_18 = arith.constant 0 : index
    %c0_19 = arith.constant 0 : index
    %21 = vector.load %arg9[%c0_18, %c0_19] : memref<64x32xbf16, #tpu.memory_space<vmem>>, vector<64x32xbf16>
    %cst_20 = arith.constant dense<0.000000e+00> : vector<8x32xf32>
    %22 = tpu.matmul %19, %21, %cst_20 {dimension_numbers = #tpu.dot_dimension_numbers<[1], [0], [0], [1], [0, 0, 1, 1], [], []>} : vector<8x64xbf16>, vector<64x32xbf16>, vector<8x32xf32> -> vector<8x32xf32>
    %23 = arith.addf %20, %22 : vector<8x32xf32>
    %c0_21 = arith.constant 0 : index
    %c0_22 = arith.constant 0 : index
    %24 = vector.load %arg11[%c0_21, %c0_22] : memref<8x32xf32, #tpu.memory_space<vmem>>, vector<8x32xf32>
    tpu.vector_store %arg11[%c0_21, %c0_22], %23 {strides = array<i32>} : memref<8x32xf32, #tpu.memory_space<vmem>>, vector<8x32xf32>,
    %c0_i32_23 = arith.constant 0 : i32
    %25 = arith.cmpi eq, %arg0, %c0_i32_23 : i32
    %26 = arith.extui %25 : i1 to i32
    %c0_i32_24 = arith.constant 0 : i32
    %27 = arith.cmpi ne, %26, %c0_i32_24 : i32
    scf.if %27 {
      %c0_25 = arith.constant 0 : index
      %c0_26 = arith.constant 0 : index
      %28 = vector.load %arg11[%c0_25, %c0_26] : memref<8x32xf32, #tpu.memory_space<vmem>>, vector<8x32xf32>
      %c0_27 = arith.constant 0 : index
      %c0_28 = arith.constant 0 : index
      %29 = vector.load %arg14[%c0_27, %c0_28] : memref<8x32xf32, #tpu.memory_space<vmem>>, vector<8x32xf32>
      %30 = arith.negf %29 : vector<8x32xf32>
      %31 = math.exp %30 : vector<8x32xf32>
      %cst_29 = arith.constant 1.000000e+00 : f32
      %32 = vector.broadcast %cst_29 : f32 to vector<8x32xf32>
      %33 = arith.addf %32, %31 : vector<8x32xf32>
      %34 = arith.divf %32, %33 : vector<8x32xf32>
      %c0_30 = arith.constant 0 : index
      %c0_31 = arith.constant 0 : index
      %35 = vector.load %arg2[%c0_30, %c0_31] : memref<8x32xf32, #tpu.memory_space<vmem>>, vector<8x32xf32>
      %36 = arith.mulf %34, %35 : vector<8x32xf32>
      %c0_32 = arith.constant 0 : index
      %c0_33 = arith.constant 0 : index
      %37 = memref.load %arg1[%c0_32, %c0_33] : memref<1x1xf32, #tpu.memory_space<smem>>
      %38 = vector.broadcast %37 : f32 to vector<8x32xf32>
      %39 = arith.mulf %36, %38 : vector<8x32xf32>
      %40 = arith.addf %28, %39 : vector<8x32xf32>
      %c0_34 = arith.constant 0 : index
      %c0_35 = arith.constant 0 : index
      %41 = vector.load %arg11[%c0_34, %c0_35] : memref<8x32xf32, #tpu.memory_space<vmem>>, vector<8x32xf32>
      tpu.vector_store %arg11[%c0_34, %c0_35], %40 {strides = array<i32>} : memref<8x32xf32, #tpu.memory_space<vmem>>, vector<8x32xf32>,
    } else {
    }
    return
  }
  func.func @transform_0(%arg0: i32) -> (i32, i32) {
    %c0_i32 = arith.constant 0 : i32
    %c0_i32_0 = arith.constant 0 : i32
    %c0_i32_1 = arith.constant 0 : i32
    return %c0_i32, %c0_i32_0 : i32, i32
  }
  func.func @transform_1(%arg0: i32) -> (i32, i32) {
    %c0_i32 = arith.constant 0 : i32
    %c0_i32_0 = arith.constant 0 : i32
    %c0_i32_1 = arith.constant 0 : i32
    return %c0_i32, %c0_i32_0 : i32, i32
  }
  func.func @transform_2(%arg0: i32) -> (i32, i32) {
    %c0_i32 = arith.constant 0 : i32
    %c0_i32_0 = arith.constant 0 : i32
    %c0_i32_1 = arith.constant 0 : i32
    return %c0_i32, %c0_i32_0 : i32, i32
  }
  func.func @transform_3(%arg0: i32) -> (i32, i32) {
    %c0_i32 = arith.constant 0 : i32
    %c0_i32_0 = arith.constant 0 : i32
    %c0_i32_1 = arith.constant 0 : i32
    return %c0_i32, %c0_i32_0 : i32, i32
  }
  func.func @transform_4(%arg0: i32) -> (i32, i32) {
    %c0_i32 = arith.constant 0 : i32
    %c0_i32_0 = arith.constant 0 : i32
    %c0_i32_1 = arith.constant 0 : i32
    return %c0_i32, %c0_i32_0 : i32, i32
  }
  func.func @transform_5(%arg0: i32) -> (i32, i32) {
    %c0_i32 = arith.constant 0 : i32
    %c0_i32_0 = arith.constant 0 : i32
    return %arg0, %c0_i32 : i32, i32
  }
  func.func @transform_6(%arg0: i32) -> (i32, i32) {
    %c0_i32 = arith.constant 0 : i32
    %c0_i32_0 = arith.constant 0 : i32
    return %c0_i32, %arg0 : i32, i32
  }
  func.func @transform_7(%arg0: i32) -> (i32, i32) {
    %c0_i32 = arith.constant 0 : i32
    %c0_i32_0 = arith.constant 0 : i32
    return %c0_i32, %arg0 : i32, i32
  }
  func.func @transform_8(%arg0: i32) -> (i32, i32) {
    %c0_i32 = arith.constant 0 : i32
    %c0_i32_0 = arith.constant 0 : i32
    return %arg0, %c0_i32 : i32, i32
  }
  func.func @transform_9(%arg0: i32) -> (i32, i32) {
    %c0_i32 = arith.constant 0 : i32
    %c0_i32_0 = arith.constant 0 : i32
    %c0_i32_1 = arith.constant 0 : i32
    return %c0_i32, %c0_i32_0 : i32, i32
  }
  func.func @transform_10(%arg0: i32) -> (i32, i32) {
    %c0_i32 = arith.constant 0 : i32
    %c0_i32_0 = arith.constant 0 : i32
    %c0_i32_1 = arith.constant 0 : i32
    return %c0_i32, %c0_i32_0 : i32, i32
  }
}

</mosaic_0001>

<llo_original>
// kernel: tpu_custom_call.1
$region0: #{tpu_custom_call.1}
  #allocation0 [shape = 'u32[]', space=smem, size = 0x4, offset = 0x4, fixed_abs, tag = 'smem constant byte address 0x4 - core index']
  #allocation1 [shape = 'u32[72,128]{1,0:T(1,128)}', space=vmem, size = 0x9000, scoped, tag = 'internal scratch']
  #allocation2 [shape = 'bf16[1,8,64]{2,1,0:T(8,128)(2,1)}', space=vmem, size = 0x800, scoped, tag = 'scratch operand']
  #allocation3 [shape = 'bf16[8,64]{1,0:T(8,128)(2,1)}', space=vmem, size = 0x800, scoped, tag = 'scratch operand']
  #allocation4 [shape = 'f32[8,32]{1,0:T(8,128)}', space=vmem, size = 0x1000, scoped, tag = 'scratch operand']
  #allocation5 [shape = 'f32[1,1]{1,0:T(1,128)S(6)}', space=smem, size = 0x200, scoped, tag = 'scoped memory for tpu_custom_call.1']
  %s0 = inlined_call_operand.<no memory space> [shape: f32[1,1], index: 0, kind: input, shape index: {}]
  %s1 = inlined_call_operand.vmem [shape: f32[8,32], index: 1, kind: input, shape index: {}]
  %s2 = inlined_call_operand.vmem [shape: f32[8,32], index: 2, kind: input, shape index: {}]
  %s3 = inlined_call_operand.vmem [shape: f32[8,32], index: 3, kind: input, shape index: {}]
  %s4 = inlined_call_operand.vmem [shape: f32[1,32], index: 4, kind: input, shape index: {}]
  %s5 = inlined_call_operand.vmem [shape: bf16[64,32], index: 5, kind: input, shape index: {}]
  %s6 = inlined_call_operand.vmem [shape: bf16[64,64], index: 6, kind: input, shape index: {}]
  %s7 = inlined_call_operand.vmem [shape: f32[1,64], index: 7, kind: input, shape index: {}]
  %s8 = inlined_call_operand.vmem [shape: bf16[64,32], index: 8, kind: input, shape index: {}]
  %s9 = inlined_call_operand.vmem [shape: f32[1,32], index: 9, kind: input, shape index: {}]
  %s10 = inlined_call_operand.hbm [shape: f32[8,32], index: 10, kind: output, shape index: {}]
  %s11 = sld [smem:[#allocation0]]
  $region58: #{tpu_custom_call.1} parent=0
    _
  %s13 = ssub.s32 1, %s11
  %s14 = scalar_select 0, %s13, %s11
  %15 = sst [smem:[#allocation5]] %s0
  $region1: #{tpu_custom_call.1} parent=0
    #allocation6 [shape = 'u8[4096]{0}', space=vmem, size = 0x1000, scoped, tag = 'output window, operand 0, single buffered']
    #allocation7 [shape = 's32[1]{0}', space=sflag, size = 0x4, scoped, tag = 'scoped memory for tpu_custom_call.1']
    %16 = vsyncpa [#allocation7], 0
    // Predicated region
    $region2: #{tpu_custom_call.1} parent=1 // pred_check
      _
    $region3: #{tpu_custom_call.1} parent=1 // pred_check_branch
      %18 = sbr.rel (0) target = $region5
    $region4: #{tpu_custom_call.1} parent=1 // pred_region
      _
    $region5: #{tpu_custom_call.1} parent=1 // pred_fallthru
      _
    // Predicated region
    $region6: #{tpu_custom_call.1} parent=1 // pred_check
      _
    $region7: #{tpu_custom_call.1} parent=1 // pred_check_branch
      %20 = sbr.rel (0) target = $region9
    $region8: #{tpu_custom_call.1} parent=1 // pred_region
      _
    $region9: #{tpu_custom_call.1} parent=1 // pred_fallthru
      _
    // Predicated region
    $region10: #{tpu_custom_call.1} parent=1 // pred_check
      _
    $region11: #{tpu_custom_call.1} parent=1 // pred_check_branch
      %22 = sbr.rel (0) target = $region13
    $region12: #{tpu_custom_call.1} parent=1 // pred_region
      _
    $region13: #{tpu_custom_call.1} parent=1 // pred_fallthru
      _
    // Predicated region
    $region14: #{tpu_custom_call.1} parent=1 // pred_check
      _
    $region15: #{tpu_custom_call.1} parent=1 // pred_check_branch
      %24 = sbr.rel (0) target = $region17
    $region16: #{tpu_custom_call.1} parent=1 // pred_region
      _
    $region17: #{tpu_custom_call.1} parent=1 // pred_fallthru
      _
    // Predicated region
    $region18: #{tpu_custom_call.1} parent=1 // pred_check
      _
    $region19: #{tpu_custom_call.1} parent=1 // pred_check_branch
      %26 = sbr.rel (0) target = $region21
    $region20: #{tpu_custom_call.1} parent=1 // pred_region
      _
    $region21: #{tpu_custom_call.1} parent=1 // pred_fallthru
      _
    // Predicated region
    $region22: #{tpu_custom_call.1} parent=1 // pred_check
      _
    $region23: #{tpu_custom_call.1} parent=1 // pred_check_branch
      %28 = sbr.rel (0) target = $region25
    $region24: #{tpu_custom_call.1} parent=1 // pred_region
      _
    $region25: #{tpu_custom_call.1} parent=1 // pred_fallthru
      _
    // Predicated region
    $region26: #{tpu_custom_call.1} parent=1 // pred_check
      _
    $region27: #{tpu_custom_call.1} parent=1 // pred_check_branch
      %30 = sbr.rel (0) target = $region29
    $region28: #{tpu_custom_call.1} parent=1 // pred_region
      _
    $region29: #{tpu_custom_call.1} parent=1 // pred_fallthru
      _
    // Predicated region
    $region30: #{tpu_custom_call.1} parent=1 // pred_check
      _
    $region31: #{tpu_custom_call.1} parent=1 // pred_check_branch
      %32 = sbr.rel (0) target = $region33
    $region32: #{tpu_custom_call.1} parent=1 // pred_region
      _
    $region33: #{tpu_custom_call.1} parent=1 // pred_fallthru
      _
    // Predicated region
    $region34: #{tpu_custom_call.1} parent=1 // pred_check
      _
    $region35: #{tpu_custom_call.1} parent=1 // pred_check_branch
      %34 = sbr.rel (0) target = $region37
    $region36: #{tpu_custom_call.1} parent=1 // pred_region
      _
    $region37: #{tpu_custom_call.1} parent=1 // pred_fallthru
      _
    // Predicated region
    $region38: #{tpu_custom_call.1} parent=1 // pred_check
      _
    $region39: #{tpu_custom_call.1} parent=1 // pred_check_branch
      %36 = sbr.rel (0) target = $region41
    $region40: #{tpu_custom_call.1} parent=1 // pred_region
      _
    $region41: #{tpu_custom_call.1} parent=1 // pred_fallthru
      _
    %p38 = scmp.eq.s32.totalorder 0, 0
    // Predicated region
    $region42: #{tpu_custom_call.1} parent=1 // pred_check
      %p39 = pneg %p38
    $region43: #{tpu_custom_call.1} parent=1 // pred_check_branch
      %41 = sbr.rel (%p39) target = $region45
    $region44: #{tpu_custom_call.1} parent=1 // pred_region
      %v42 = vld [vmem:[%s1] sm:$0xff]
      %v43 = vld [vmem:[%s2] sm:$0xff]
      %v44 = vld [vmem:[%s3] sm:$0xff]
      %vm45 = vcmask 261120
      %v46 = vsel %vm45, %v42, 0.0
      %v47 = vrot.slane %v46, 4
      %v48 = vadd.f32 %v46, %v47
      %v49 = vrot.slane %v48, 2
      %v50 = vadd.f32 %v48, %v49
      %v51 = vrot.slane %v50, 1
      %v52 = vadd.f32 %v50, %v51
      %v53 = vrcp.pop 8.0
      %v54 = vmul.f32 8.0, %v53
      %v55 = vsub.f32 1.0, %v54
      %v56 = vmul.f32 %v53, %v55
      %v57 = vadd.f32 %v53, %v56
      %vm58 = vweird.f32 %v53
      %v59 = vsel %vm58, %v53, %v57
      %v60 = vmul.f32 %v52, %v59
      %v61 = vsub.f32 %v42, %v60
      %v62 = vmul.f32 %v61, %v61
      %v63 = vsel %vm45, %v62, 0.0
      %v64 = vrot.slane %v63, 4
      %v65 = vadd.f32 %v63, %v64
      %v66 = vrot.slane %v65, 2
      %v67 = vadd.f32 %v65, %v66
      %v68 = vrot.slane %v67, 1
      %v69 = vadd.f32 %v67, %v68
      %v70 = vmul.f32 %v69, %v59
      %v71 = vadd.f32 %v70, 1e-05
      %v72 = vrsqrt.pop %v71
      %v73 = vmul.f32 %v72, %v71
      %v74 = vmul.f32 %v73, %v72
      %v75 = vmul.f32 0.5, %v74
      %v76 = vsub.f32 1.5, %v75
      %v77 = vmul.f32 %v72, %v76
      %vm78 = vweird.f32 %v71
      %vm79 = vweird.f32 %v72
      %vm80 = vmor %vm78, %vm79
      %v81 = vsel %vm80, %v72, %v77
      %v82 = vsel %vm45, %v43, 0.0
      %v83 = vrot.slane %v82, 4
      %v84 = vadd.f32 %v82, %v83
      %v85 = vrot.slane %v84, 2
      %v86 = vadd.f32 %v84, %v85
      %v87 = vrot.slane %v86, 1
      %v88 = vadd.f32 %v86, %v87
      %v89 = vmul.f32 %v88, %v59
      %v90 = vsub.f32 %v43, %v89
      %v91 = vmul.f32 %v90, %v90
      %v92 = vsel %vm45, %v91, 0.0
      %v93 = vrot.slane %v92, 4
      %v94 = vadd.f32 %v92, %v93
      %v95 = vrot.slane %v94, 2
      %v96 = vadd.f32 %v94, %v95
      %v97 = vrot.slane %v96, 1
      %v98 = vadd.f32 %v96, %v97
      %v99 = vmul.f32 %v98, %v59
      %v100 = vadd.f32 %v99, 1e-05
      %v101 = vrsqrt.pop %v100
      %v102 = vmul.f32 %v101, %v100
      %v103 = vmul.f32 %v102, %v101
      %v104 = vmul.f32 0.5, %v103
      %v105 = vsub.f32 1.5, %v104
      %v106 = vmul.f32 %v101, %v105
      %vm107 = vweird.f32 %v100
      %vm108 = vweird.f32 %v101
      %vm109 = vmor %vm107, %vm108
      %v110 = vsel %vm109, %v101, %v106
      %v111 = vmul.f32 %v44, %v81
      %v112 = vmul.f32 %v60, %v111
      %v114 = vrot.slane %v112, 6
      %v116 = vsub.f32 %v44, %v114
      %v117 = vperm.slane %v111, 0
      %v118 = vmul.f32 %v42, %v117
      %v119 = vperm.slane %v116, 2
      %v120 = vadd.f32 %v118, %v119
      %v121 = vmax.f32 %v120, 0.0
      %v122 = vmul.f32 %v44, %v110
      %v123 = vmul.f32 %v89, %v122
      %v125 = vrot.slane %v123, 6
      %v127 = vsub.f32 %v44, %v125
      %v128 = vperm.slane %v122, 1
      %v129 = vmul.f32 %v43, %v128
      %v130 = vperm.slane %v127, 3
      %v131 = vadd.f32 %v129, %v130
      %v132 = vmax.f32 %v131, 0.0
      %134 = vrot.lane.b32.xlu0 %v132, 32
      %v135 = vpop.permute.xlu0 %134
      %v137 = vsel %vm45, %v121, %v135
      %v138 = vpack.c.bf16 %v137, %v137
      %v139 = vperm.slane %v111, 4
      %v140 = vmul.f32 %v42, %v139
      %v141 = vperm.slane %v116, 6
      %v142 = vadd.f32 %v140, %v141
      %v143 = vmax.f32 %v142, 0.0
      %v144 = vperm.slane %v122, 5
      %v145 = vmul.f32 %v43, %v144
      %v146 = vperm.slane %v127, 7
      %v147 = vadd.f32 %v145, %v146
      %v148 = vmax.f32 %v147, 0.0
      %150 = vrot.lane.b32.xlu0 %v148, 32
      %v151 = vpop.permute.xlu0 %150
      %v153 = vsel %vm45, %v143, %v151
      %v154 = vpack.c.bf16 %v153, %v153
      %vm155 = vcmask 519168
      %156 = vst.msk [vmem:[#allocation3] sm:$0xf] %vm155, %v154
      %157 = vst.msk [vmem:[#allocation2] sm:$0xf] %vm155, %v138
      %v158 = vld [vmem:[%s4] sm:$0x1]
      %v160 = vperm.slane %v158, 0
      %162 = vst.msk [vmem:[#allocation4] sm:$0xff] %vm45, %v160
      %v163 = vld [vmem:[%s9] sm:$0x1]
      %v165 = vperm.slane %v163, 0
      %167 = vst.msk [vmem:[#allocation6] sm:$0xff] %vm45, %v165
    $region45: #{tpu_custom_call.1} parent=1 // pred_fallthru
      _
    %v168 = vld [vmem:[#allocation4] sm:$0xff]
    %v169 = vld [vmem:[#allocation2] sm:$0xf]
    %v170 = vld [vmem:[%s5] sm:$0xf]
    %v171 = vld [vmem:[%s5 + $0x4] sm:$0xf]
    %v172 = vld [vmem:[%s5 + $0x8] sm:$0xf]
    %v173 = vld [vmem:[%s5 + $0xc] sm:$0xf]
    %v174 = vld [vmem:[%s5 + $0x10] sm:$0xf]
    %v175 = vld [vmem:[%s5 + $0x14] sm:$0xf]
    %v176 = vld [vmem:[%s5 + $0x18] sm:$0xf]
    %v177 = vld [vmem:[%s5 + $0x1c] sm:$0xf]
    %v186 = vunpack.c.l.b16 %v170
    %v187 = vunpack.c.l.b16 %v171
    %v188 = vunpack.c.l.b16 %v172
    %v189 = vunpack.c.l.b16 %v173
    %v190 = vunpack.c.l.b16 %v174
    %v191 = vunpack.c.l.b16 %v175
    %v192 = vunpack.c.l.b16 %v176
    %v193 = vunpack.c.l.b16 %v177
    %v194 = vpack.c.b16 %v187, %v186
    %v195 = vpack.c.b16 %v189, %v188
    %v196 = vpack.c.b16 %v191, %v190
    %v197 = vpack.c.b16 %v193, %v192
    %vm202 = vcmask 523264
    %v204 = vsel %vm202, %v169, 0
    %206 = vmatpush.bf16.msra.mxu0 0
    %207 = vmatpush.bf16.msra.mxu0 0
    %208 = vmatpush.bf16.msra.mxu0 0
    %209 = vmatpush.bf16.msra.mxu0 0
    %210 = vmatpush.bf16.msra.mxu0 %v197
    %211 = vmatpush.bf16.msra.mxu0 %v196
    %212 = vmatpush.bf16.msra.mxu0 %v195
    %213 = vmatpush.bf16.msra.mxu0 %v194
    %214 = vmatmul.bf16.gmra.mxu0 %v204
    %v215 = vpop.f32.mrf.mxu0
    %v216 = vadd.f32 0.0, %v215
    %v217 = vpop.f32.mrf.mxu0
    %218 = vdwg.mxu0
    %v219 = vadd.f32 %v168, %v216
    %vm220 = vcmask 261120
    %221 = vst.msk [vmem:[#allocation4] sm:$0xff] %vm220, %v219
    %v222 = vld [vmem:[#allocation3] sm:$0xf]
    %v223 = vld [vmem:[%s6] sm:$0xf]
    %v224 = vld [vmem:[%s6 + $0x4] sm:$0xf]
    %v225 = vld [vmem:[%s6 + $0x8] sm:$0xf]
    %v226 = vld [vmem:[%s6 + $0xc] sm:$0xf]
    %v227 = vld [vmem:[%s6 + $0x10] sm:$0xf]
    %v228 = vld [vmem:[%s6 + $0x14] sm:$0xf]
    %v229 = vld [vmem:[%s6 + $0x18] sm:$0xf]
    %v230 = vld [vmem:[%s6 + $0x1c] sm:$0xf]
    %v231 = vld [vmem:[%s7] sm:$0x1]
    %v233 = vperm.slane %v231, 0
    %v243 = vunpack.c.l.b16 %v223
    %v244 = vunpack.c.l.b16 %v224
    %v245 = vunpack.c.l.b16 %v225
    %v246 = vunpack.c.l.b16 %v226
    %v247 = vunpack.c.l.b16 %v227
    %v248 = vunpack.c.l.b16 %v228
    %v249 = vunpack.c.l.b16 %v229
    %v250 = vunpack.c.l.b16 %v230
    %v251 = vpack.c.b16 %v244, %v243
    %v252 = vpack.c.b16 %v246, %v245
    %v253 = vpack.c.b16 %v248, %v247
    %v254 = vpack.c.b16 %v250, %v249
    %v260 = vsel %vm202, %v222, 0
    %262 = vmatpush.bf16.msra.mxu0 0
    %263 = vmatpush.bf16.msra.mxu0 0
    %264 = vmatpush.bf16.msra.mxu0 0
    %265 = vmatpush.bf16.msra.mxu0 0
    %266 = vmatpush.bf16.msra.mxu0 %v254
    %267 = vmatpush.bf16.msra.mxu0 %v253
    %268 = vmatpush.bf16.msra.mxu0 %v252
    %269 = vmatpush.bf16.msra.mxu0 %v251
    %270 = vmatmul.bf16.gmra.mxu0 %v260
    %v271 = vpop.f32.mrf.mxu0
    %v272 = vadd.f32 %v233, %v271
    %v273 = vpop.f32.mrf.mxu0
    %274 = vdwg.mxu0
    %v275 = vmax.f32 %v272, 0.0
    %v276 = vpack.c.bf16 %v275, %v275
    %v277 = vld [vmem:[#allocation6] sm:$0xff]
    %v278 = vld [vmem:[%s8] sm:$0xf]
    %v279 = vld [vmem:[%s8 + $0x4] sm:$0xf]
    %v280 = vld [vmem:[%s8 + $0x8] sm:$0xf]
    %v281 = vld [vmem:[%s8 + $0xc] sm:$0xf]
    %v282 = vld [vmem:[%s8 + $0x10] sm:$0xf]
    %v283 = vld [vmem:[%s8 + $0x14] sm:$0xf]
    %v284 = vld [vmem:[%s8 + $0x18] sm:$0xf]
    %v285 = vld [vmem:[%s8 + $0x1c] sm:$0xf]
    %v294 = vunpack.c.l.b16 %v278
    %v295 = vunpack.c.l.b16 %v279
    %v296 = vunpack.c.l.b16 %v280
    %v297 = vunpack.c.l.b16 %v281
    %v298 = vunpack.c.l.b16 %v282
    %v299 = vunpack.c.l.b16 %v283
    %v300 = vunpack.c.l.b16 %v284
    %v301 = vunpack.c.l.b16 %v285
    %v302 = vpack.c.b16 %v295, %v294
    %v303 = vpack.c.b16 %v297, %v296
    %v304 = vpack.c.b16 %v299, %v298
    %v305 = vpack.c.b16 %v301, %v300
    %v311 = vsel %vm202, %v276, 0
    %313 = vmatpush.bf16.msra.mxu0 0
    %314 = vmatpush.bf16.msra.mxu0 0
    %315 = vmatpush.bf16.msra.mxu0 0
    %316 = vmatpush.bf16.msra.mxu0 0
    %317 = vmatpush.bf16.msra.mxu0 %v305
    %318 = vmatpush.bf16.msra.mxu0 %v304
    %319 = vmatpush.bf16.msra.mxu0 %v303
    %320 = vmatpush.bf16.msra.mxu0 %v302
    %321 = vmatmul.bf16.gmra.mxu0 %v311
    %v322 = vpop.f32.mrf.mxu0
    %v323 = vadd.f32 0.0, %v322
    %v324 = vpop.f32.mrf.mxu0
    %325 = vdwg.mxu0
    %v326 = vadd.f32 %v277, %v323
    %327 = vst.msk [vmem:[#allocation6] sm:$0xff] %vm220, %v326
    // Predicated region
    $region46: #{tpu_custom_call.1} parent=1 // pred_check
      %p328 = pneg %p38
    $region47: #{tpu_custom_call.1} parent=1 // pred_check_branch
      %330 = sbr.rel (%p328) target = $region49
    $region48: #{tpu_custom_call.1} parent=1 // pred_region
      %v331 = vld [vmem:[#allocation6] sm:$0xff]
      %v332 = vld [vmem:[#allocation4] sm:$0xff]
      %v333 = vxor.u32 %v332, 2147483648
      %v334 = vmul.f32 %v333, 1.442695
      %v335 = vpow.pop %v334
      %v336 = vadd.f32 %v335, 1.0
      %v337 = vrcp.pop %v336
      %v338 = vmul.f32 %v336, %v337
      %v339 = vsub.f32 1.0, %v338
      %v340 = vmul.f32 %v337, %v339
      %v341 = vadd.f32 %v337, %v340
      %vm342 = vweird.f32 %v336
      %vm343 = vweird.f32 %v337
      %vm344 = vmor %vm342, %vm343
      %v345 = vsel %vm344, %v337, %v341
      %v346 = vand.u32 2147483647, %v336
      %vm347 = vcmp.eq.f32.partialorder %v346, 8.507059e+37
      %v348 = vand.u32 %v336, 2147483648
      %v349 = vor.u32 1.1754944e-38, %v348
      %v350 = vsel %vm347, %v349, %v345
      %v351 = vmul.f32 1.0, %v350
      %v352 = vld [vmem:[%s1] sm:$0xff]
      %v353 = vmul.f32 %v351, %v352
      %s354 = sld [smem:[#allocation5]]
      %v355 = vstv %s354
      %v356 = vmul.f32 %v353, %v355
      %v357 = vadd.f32 %v331, %v356
      %358 = vst.msk [vmem:[#allocation6] sm:$0xff] %vm220, %v357
    $region49: #{tpu_custom_call.1} parent=1 // pred_fallthru
      _
    // Predicated region
    $region50: #{tpu_custom_call.1} parent=1 // pred_check
      _
    $region51: #{tpu_custom_call.1} parent=1 // pred_check_branch
      %360 = sbr.rel (0) target = $region53
    $region52: #{tpu_custom_call.1} parent=1 // pred_region
      %362 = vsyncadd [#allocation7], 0
      %s364 = sshll.u32 [#allocation6], 4
      %s365 = int_to_ptr.vmem [resolvable:$true] %s364
      %s366 = sshll.u32 %s10, 4
      %s367 = int_to_ptr.hbm [resolvable:$true] %s366
      %369 = dma.vmem_to_hbm [thread:$0]  %s365, 128, %s367, [#allocation7]
    $region53: #{tpu_custom_call.1} parent=1 // pred_fallthru
      _
    // Predicated region
    $region54: #{tpu_custom_call.1} parent=1 // pred_check
      _
    $region55: #{tpu_custom_call.1} parent=1 // pred_check_branch
      %371 = sbr.rel (0) target = $region57
    $region56: #{tpu_custom_call.1} parent=1 // pred_region
      %373 = dma.done [#allocation7], 128
    $region57: #{tpu_custom_call.1} parent=1 // pred_fallthru
      _
    %374 = vsyncpa [#allocation7], 1

</llo_original>
